<compile_context>
chip_gen: v7x
topology: tpu7x:2x2x1
jax: 0.10.0
libtpu: 0.0.40
codegen_flags: <defaults>
</compile_context>

<pallas_src>
import functools

import jax
import jax.numpy as jnp
from jax.experimental import pallas as pl
from jax.experimental.pallas import tpu as pltpu


def _causal_conv1d_kernel(x_ref, w_ref, b_ref, o_ref, carry_ref, *,
                          K, dilation, P, compute_dtype):
    # x_ref    : (1, C_in, TL)     current time tile (NCW, time on lanes)
    # w_ref    : (C_out, K*C_in)   fused per-tap weights, tap-major rows
    # b_ref    : (C_out, 1)        bias, f32
    # o_ref    : (1, C_out, TL)    output tile
    # carry_ref: (C_in, max(P,1))  last P timesteps of the previous time tile
    TL = x_ref.shape[2]
    t = pl.program_id(1)

    x_tile = x_ref[0]                                               # (C_in, TL)

    if P > 0:
        # Causal zero padding handled in-kernel: the halo of the first time
        # tile of every batch element is all zeros.
        @pl.when(t == 0)
        def _():
            carry_ref[...] = jnp.zeros_like(carry_ref)

        x_full = jnp.concatenate([carry_ref[...], x_tile], axis=1)  # (C_in, P+TL)
    else:
        x_full = x_tile

    # Fuse the K dilated taps into one matmul: contraction depth K*C_in instead
    # of K tiny depth-C_in matmuls plus K-1 VPU accumulate passes.
    taps = [x_full[:, j * dilation:j * dilation + TL] for j in range(K)]
    x_cat = jnp.concatenate(taps, axis=0) if K > 1 else taps[0]     # (K*C_in, TL)

    acc = jnp.dot(w_ref[...].astype(compute_dtype),
                  x_cat.astype(compute_dtype),
                  preferred_element_type=jnp.float32)               # (C_out, TL)
    o_ref[0] = (acc + b_ref[...]).astype(o_ref.dtype)

    if P > 0:
        # Hand the last P timesteps of this tile to the next time tile.
        carry_ref[...] = x_full[:, TL:]


def _vmem_capacity_bytes():
    try:
        return int(pltpu.get_tpu_info().vmem_capacity_bytes)
    except Exception:
        return 64 * 1024 * 1024  # conservative (v7x per-core VMEM)


def _choose_time_tile(L, C_in, C_out, itemsize):
    """Largest lane-aligned time tile whose double-buffered in/out slabs stay
    well under the scoped VMEM limit on every TPU generation."""
    if L % 128 != 0:
        # Fall back to a full-length block so the (8,128) BlockSpec rule holds.
        # (For very long, oddly-sized L, pad the time axis to a multiple of 128
        #  upstream instead.)
        return L
    budget = _vmem_capacity_bytes() // 8          # generous headroom
    per_step = 2 * (C_in + C_out) * itemsize      # double-buffered in+out / step
    tl = (budget // max(per_step, 1)) // 128 * 128
    tl = max(128, min(2048, tl))
    while tl > 128 and L % tl:
        tl -= 128
    return tl if L % tl == 0 else L


def causal_conv1d(x, weight, bias, dilation=1, *,
                  compute_dtype=jnp.bfloat16, time_tile=None):
    """PyTorch CausalConv1d forward.

    x: (N, C_in, L), weight: (C_out, C_in, K), bias: (C_out,).
    Returns (N, C_out, L) in x.dtype.  The matmul runs in `compute_dtype`
    (bf16 by default, MXU-native) with f32 accumulation and f32 bias add.
    """
    N, C_in, L = x.shape
    C_out, _, K = weight.shape
    P = (K - 1) * dilation

    TL = int(time_tile) if time_tile is not None else _choose_time_tile(
        L, C_in, C_out, jnp.dtype(x.dtype).itemsize)
    assert L % TL == 0, (L, TL)
    num_t = L // TL

    # Tiny parameter reshapes (negligible HBM traffic): fold the taps into the
    # contraction axis, rows ordered tap-major to match the in-kernel concat.
    w2 = jnp.transpose(weight, (0, 2, 1)).reshape(C_out, K * C_in)
    b2 = bias.astype(jnp.float32).reshape(C_out, 1)

    kernel = functools.partial(_causal_conv1d_kernel, K=K, dilation=dilation,
                               P=P, compute_dtype=compute_dtype)

    return pl.pallas_call(
        kernel,
        out_shape=jax.ShapeDtypeStruct((N, C_out, L), x.dtype),
        grid_spec=pltpu.PrefetchScalarGridSpec(
            num_scalar_prefetch=0,
            grid=(N, num_t),
            in_specs=[
                pl.BlockSpec((1, C_in, TL), lambda b, t: (b, 0, t)),
                # Constant index_map => weights/bias fetched once and then kept
                # resident (Pallas skips redundant re-copies).
                pl.BlockSpec((C_out, K * C_in), lambda b, t: (0, 0)),
                pl.BlockSpec((C_out, 1), lambda b, t: (0, 0)),
            ],
            out_specs=pl.BlockSpec((1, C_out, TL), lambda b, t: (b, 0, t)),
            scratch_shapes=[pltpu.VMEM((C_in, max(P, 1)), x.dtype)],
        ),
        compiler_params=pltpu.CompilerParams(
            # Batch axis can be split across v7x's two TensorCores; the time
            # axis must stay sequential because of the causal halo carry.
            dimension_semantics=("parallel", "arbitrary"),
            vmem_limit_bytes=32 * 1024 * 1024,
        ),
    )(x, w2, b2)


def _reference_causal_conv1d(x, weight, bias, dilation):
    """Pure-JAX reference with the exact PyTorch CausalConv1d semantics."""
    K = weight.shape[-1]
    P = (K - 1) * dilation
    y = jax.lax.conv_general_dilated(
        x, weight,
        window_strides=(1,),
        padding=[(P, P)],
        rhs_dilation=(dilation,),
        dimension_numbers=("NCH", "OIH", "NCH"),
        precision=jax.lax.Precision.HIGHEST)
    y = y + bias[None, :, None]
    if P:
        y = y[:, :, :-P]
    return y


if __name__ == "__main__":
    key = jax.random.PRNGKey(0)

    def make_inputs(k, N, C_in, C_out, L, K):
        kx, kw, kb = jax.random.split(k, 3)
        x = jax.random.normal(kx, (N, C_in, L), dtype=jnp.float32)
        fan_in = C_in * K
        bound = 1.0 / (fan_in ** 0.5)
        w = jax.random.uniform(kw, (C_out, C_in, K), minval=-bound,
                               maxval=bound, dtype=jnp.float32)
        b = jax.random.uniform(kb, (C_out,), minval=-bound, maxval=bound,
                               dtype=jnp.float32)
        return x, w, b

    cases = [
        # (N, C_in, C_out, L,  K, dilation, time_tile)
        (2, 4, 8, 16, 3, 2, None),   # toy shape, single full-length tile
        (2, 4, 8, 384, 3, 2, 128),   # 3 time tiles -> exercises the halo carry
        (1, 4, 8, 256, 1, 1, 128),   # K == 1 (P == 0) edge case
    ]

    for idx, (N, C_in, C_out, L, K, d, TL) in enumerate(cases):
        key, sub = jax.random.split(key)
        x, w, b = make_inputs(sub, N, C_in, C_out, L, K)

        y = causal_conv1d(x, w, b, dilation=d, time_tile=TL)
        y = jax.block_until_ready(y)
        assert y.shape == (N, C_out, L), (idx, y.shape)

        # Kernel multiplies in bf16 and accumulates in f32; compare against the
        # reference evaluated on bf16-rounded operands (accumulation-order
        # differences only).
        x_r = x.astype(jnp.bfloat16).astype(jnp.float32)
        w_r = w.astype(jnp.bfloat16).astype(jnp.float32)
        y_ref = _reference_causal_conv1d(x_r, w_r, b, d)
        err = float(jnp.max(jnp.abs(y - y_ref)))
        assert jnp.allclose(y, y_ref, atol=1e-4, rtol=1e-4), (idx, err)

    print("KERNEL_OK")
</pallas_src>

<mosaic_0001>
module attributes {stable_mosaic.version = 11 : i64} {
  func.func @_causal_conv1d_kernel(%arg0: i32, %arg1: i32, %arg2: memref<1x4x16xf32, #tpu.memory_space<vmem>>, %arg3: memref<8x12xf32, #tpu.memory_space<vmem>>, %arg4: memref<8x1xf32, #tpu.memory_space<vmem>>, %arg5: memref<1x8x16xf32, #tpu.memory_space<vmem>>, %arg6: memref<4x4xf32, #tpu.memory_space<vmem>>) attributes {dimension_semantics = [#tpu.dimension_semantics<parallel>, #tpu.dimension_semantics<arbitrary>], iteration_bounds = array<i64: 2, 1>, scalar_prefetch = 0 : i64, scratch_operands = 1 : i64, tpu.core_type = #tpu.core_type<tc>, window_params = [{transform_indices = @transform_0, window_bounds = array<i64: 1, 4, 16>}, {pipeline_mode = #tpu.pipeline_mode<synchronous>, transform_indices = @transform_1, window_bounds = array<i64: 8, 12>}, {pipeline_mode = #tpu.pipeline_mode<synchronous>, transform_indices = @transform_2, window_bounds = array<i64: 8, 1>}, {transform_indices = @transform_3, window_bounds = array<i64: 1, 8, 16>}]} {
    %c0 = arith.constant 0 : index
    %c0_0 = arith.constant 0 : index
    %c0_1 = arith.constant 0 : index
    %0 = vector.load %arg2[%c0, %c0_0, %c0_1] : memref<1x4x16xf32, #tpu.memory_space<vmem>>, vector<1x4x16xf32>
    %1 = vector.shape_cast %0 : vector<1x4x16xf32> to vector<4x16xf32>
    %c0_i32 = arith.constant 0 : i32
    %2 = arith.cmpi eq, %arg1, %c0_i32 : i32
    %3 = arith.extui %2 : i1 to i32
    %c0_i32_2 = arith.constant 0 : i32
    %4 = arith.cmpi ne, %3, %c0_i32_2 : i32
    scf.if %4 {
      %cst_14 = arith.constant 0.000000e+00 : f32
      %23 = vector.broadcast %cst_14 : f32 to vector<4x4xf32>
      %c0_15 = arith.constant 0 : index
      %c0_16 = arith.constant 0 : index
      %24 = vector.load %arg6[%c0_15, %c0_16] : memref<4x4xf32, #tpu.memory_space<vmem>>, vector<4x4xf32>
      tpu.vector_store %arg6[%c0_15, %c0_16], %23 {strides = array<i32>} : memref<4x4xf32, #tpu.memory_space<vmem>>, vector<4x4xf32>,
    } else {
    }
    %c0_3 = arith.constant 0 : index
    %c0_4 = arith.constant 0 : index
    %5 = vector.load %arg6[%c0_3, %c0_4] : memref<4x4xf32, #tpu.memory_space<vmem>>, vector<4x4xf32>
    %6 = tpu.concatenate %5, %1 in 1 : vector<4x4xf32>, vector<4x16xf32> -> vector<4x20xf32>
    %7 = vector.extract_strided_slice %6 {offsets = [0, 0], sizes = [4, 16], strides = [1, 1]} : vector<4x20xf32> to vector<4x16xf32>
    %8 = vector.extract_strided_slice %6 {offsets = [0, 2], sizes = [4, 16], strides = [1, 1]} : vector<4x20xf32> to vector<4x16xf32>
    %9 = vector.extract_strided_slice %6 {offsets = [0, 4], sizes = [4, 16], strides = [1, 1]} : vector<4x20xf32> to vector<4x16xf32>
    %10 = tpu.concatenate %7, %8, %9 in 0 : vector<4x16xf32>, vector<4x16xf32>, vector<4x16xf32> -> vector<12x16xf32>
    %c0_5 = arith.constant 0 : index
    %c0_6 = arith.constant 0 : index
    %11 = vector.load %arg3[%c0_5, %c0_6] : memref<8x12xf32, #tpu.memory_space<vmem>>, vector<8x12xf32>
    %12 = arith.truncf %11 : vector<8x12xf32> to vector<8x12xbf16>
    %13 = arith.truncf %10 : vector<12x16xf32> to vector<12x16xbf16>
    %cst = arith.constant dense<0.000000e+00> : vector<8x16xf32>
    %14 = tpu.matmul %12, %13, %cst {dimension_numbers = #tpu.dot_dimension_numbers<[1], [0], [0], [1], [0, 0, 1, 1], [], []>} : vector<8x12xbf16>, vector<12x16xbf16>, vector<8x16xf32> -> vector<8x16xf32>
    %c0_7 = arith.constant 0 : index
    %c0_8 = arith.constant 0 : index
    %15 = vector.load %arg4[%c0_7, %c0_8] : memref<8x1xf32, #tpu.memory_space<vmem>>, vector<8x1xf32>
    %16 = vector.broadcast %15 : vector<8x1xf32> to vector<8x16xf32>
    %17 = arith.addf %14, %16 : vector<8x16xf32>
    %c0_9 = arith.constant 0 : index
    %c0_10 = arith.constant 0 : index
    %c0_11 = arith.constant 0 : index
    %18 = vector.load %arg5[%c0_9, %c0_10, %c0_11] : memref<1x8x16xf32, #tpu.memory_space<vmem>>, vector<1x8x16xf32>
    %19 = vector.shape_cast %18 : vector<1x8x16xf32> to vector<8x16xf32>
    %20 = vector.shape_cast %17 : vector<8x16xf32> to vector<1x8x16xf32>
    tpu.vector_store %arg5[%c0_9, %c0_10, %c0_11], %20 {strides = array<i32>} : memref<1x8x16xf32, #tpu.memory_space<vmem>>, vector<1x8x16xf32>,
    %21 = vector.extract_strided_slice %6 {offsets = [0, 16], sizes = [4, 4], strides = [1, 1]} : vector<4x20xf32> to vector<4x4xf32>
    %c0_12 = arith.constant 0 : index
    %c0_13 = arith.constant 0 : index
    %22 = vector.load %arg6[%c0_12, %c0_13] : memref<4x4xf32, #tpu.memory_space<vmem>>, vector<4x4xf32>
    tpu.vector_store %arg6[%c0_12, %c0_13], %21 {strides = array<i32>} : memref<4x4xf32, #tpu.memory_space<vmem>>, vector<4x4xf32>,
    return
  }
  func.func @transform_0(%arg0: i32, %arg1: i32) -> (i32, i32, i32) {
    %c0_i32 = arith.constant 0 : i32
    %c0_i32_0 = arith.constant 0 : i32
    return %arg0, %c0_i32, %arg1 : i32, i32, i32
  }
  func.func @transform_1(%arg0: i32, %arg1: i32) -> (i32, i32) {
    %c0_i32 = arith.constant 0 : i32
    %c0_i32_0 = arith.constant 0 : i32
    %c0_i32_1 = arith.constant 0 : i32
    return %c0_i32, %c0_i32_0 : i32, i32
  }
  func.func @transform_2(%arg0: i32, %arg1: i32) -> (i32, i32) {
    %c0_i32 = arith.constant 0 : i32
    %c0_i32_0 = arith.constant 0 : i32
    %c0_i32_1 = arith.constant 0 : i32
    return %c0_i32, %c0_i32_0 : i32, i32
  }
  func.func @transform_3(%arg0: i32, %arg1: i32) -> (i32, i32, i32) {
    %c0_i32 = arith.constant 0 : i32
    %c0_i32_0 = arith.constant 0 : i32
    return %arg0, %c0_i32, %arg1 : i32, i32, i32
  }
}

</mosaic_0001>

<llo_original>
// kernel: tpu_custom_call.1
$region0: #{tpu_custom_call.1}
  #allocation0 [shape = 'u32[]', space=smem, size = 0x4, offset = 0x4, fixed_abs, tag = 'smem constant byte address 0x4 - core index']
  #allocation1 [shape = 'u32[144,128]{1,0:T(1,128)}', space=vmem, size = 0x12000, scoped, tag = 'internal scratch']
  #allocation2 [shape = 'f32[4,4]{1,0:T(4,128)}', space=vmem, size = 0x800, scoped, tag = 'scratch operand']
  %s0 = inlined_call_operand.vmem [shape: f32[2,4,16], index: 0, kind: input, shape index: {}]
  %s1 = inlined_call_operand.hbm [shape: f32[8,12], index: 1, kind: input, shape index: {}]
  %s2 = inlined_call_operand.vmem [shape: f32[8,1], index: 2, kind: input, shape index: {}]
  %s3 = inlined_call_operand.hbm [shape: f32[2,8,16], index: 3, kind: output, shape index: {}]
  %s4 = sld [smem:[#allocation0]]
  $region53: #{tpu_custom_call.1} parent=0
    _
  %s6 = ssub.s32 1, %s4
  %s7 = scalar_select 0, %s6, %s4
  $region1: #{tpu_custom_call.1} parent=0
    #allocation3 [shape = 'u8[4096]{0}', space=vmem, size = 0x1000, scoped, tag = 'input window, operand 1, single buffered']
    #allocation4 [shape = 's32[2]{0}', space=sflag, size = 0x8, scoped, tag = 'scoped memory for tpu_custom_call.1']
    #allocation5 [shape = 's32[2]{0}', space=sflag, size = 0x8, scoped, tag = 'scoped memory for tpu_custom_call.1']
    #allocation6 [shape = 'u8[8192]{0}', space=vmem, size = 0x2000, scoped, tag = 'output window, operand 0']
    %8 = vsyncpa [#allocation4], 0
    %9 = vsyncpa [#allocation5], 0
    %s10 = scalar_lea.sflag [#allocation5], 1
    %11 = vsyncpa %s10, 0
    loop: start=0, step=1, limit=4
    $region2: #{tpu_custom_call.1} parent=1 // loop_pre_header
      _
    $region3: #{tpu_custom_call.1} parent=1 // loop_header
      %s13 = sphi 0, %s17
      %p14 = scmp.ge.s32.totalorder %s13, 4
      %s20 = sphi 0, %s32
      %s21 = sphi 0, %s28
      %s22 = sphi 0, %s20
      %s23 = sphi 0, %s21
      %s24 = sphi 0, %s22
      %s25 = sphi 0, %s23
      %s37 = sphi 0, %s39
      %s40 = sphi 0, %s37
      %s41 = sphi 0, %s40
      %s57 = sphi 0, %s41
      %s61 = sphi 0, %s61
      %s63 = sphi 0, %s61
      %s64 = sphi 0, %s63
      %s78 = sphi 0, %s64
      %s82 = sphi 0, %s82
      %s84 = sphi 0, %s82
      %s85 = sphi 0, %s84
      %s99 = sphi 0, %s85
      %s107 = sphi 0, %s109
      %s110 = sphi 0, %s107
      %s111 = sphi 0, %s110
      %s127 = sphi 0, %s111
    $region4: #{tpu_custom_call.1} parent=1 // loop_header_branch
      %16 = sbr.rel (%p14) target = $region8
    $region5: #{tpu_custom_call.1} parent=1 // loop_body
      %s18 = ssub.s32 %s13, 1
      %s19 = ssub.s32 %s13, 2
      %s26 = sadd.s32 1, %s21
      %p27 = scmp.ge.s32.totalorder %s26, 1
      %s28 = scalar_select %p27, 0, %s26
      %s29 = sadd.s32 1, %s20
      %s30 = scalar_select %p27, %s29, %s20
      %p31 = scmp.ge.s32.totalorder %s30, 2
      %s32 = scalar_select %p31, 0, %s30
      %s33 = ssub.s32 %s20, %s32
      %s34 = ssub.s32 %s21, %s28
      %s35 = sor.u32 %s33, %s34
      %p36 = scmp.eq.s32.totalorder %s35, 0
      %s38 = sadd.s32 %s37, 1
      %s39 = scalar_select %p36, %s37, %s38
      %p42 = pneg %p36
      %p43 = scmp.eq.s32.totalorder %s13, 1
      %p44 = por %p42, %p43
      %p45 = scmp.ne.s32.totalorder %s37, %s40
      %p46 = scmp.eq.s32.totalorder %s13, 0
      %p47 = por %p45, %p46
      %p48 = scmp.ne.s32.totalorder %s37, %s40
      %p49 = scmp.eq.s32.totalorder %s18, 1
      %p50 = por %p48, %p49
      %p51 = scmp.ne.s32.totalorder %s40, %s41
      %p52 = scmp.eq.s32.totalorder %s18, 0
      %p53 = por %p51, %p52
      %p54 = scmp.ne.s32.totalorder %s40, %s41
      %p55 = scmp.eq.s32.totalorder %s19, 1
      %p56 = por %p54, %p55
      %p58 = scmp.ne.s32.totalorder %s41, %s57
      %p59 = scmp.eq.s32.totalorder %s19, 0
      %p60 = por %p58, %p59
      %s62 = sadd.s32 %s61, 1
      %p65 = scmp.eq.s32.totalorder %s13, 1
      %p66 = scmp.ne.s32.totalorder %s61, %s63
      %p67 = scmp.eq.s32.totalorder %s13, 0
      %p68 = por %p66, %p67
      %p69 = scmp.ne.s32.totalorder %s61, %s63
      %p70 = scmp.eq.s32.totalorder %s18, 1
      %p71 = por %p69, %p70
      %p72 = scmp.ne.s32.totalorder %s63, %s64
      %p73 = scmp.eq.s32.totalorder %s18, 0
      %p74 = por %p72, %p73
      %p75 = scmp.ne.s32.totalorder %s63, %s64
      %p76 = scmp.eq.s32.totalorder %s19, 1
      %p77 = por %p75, %p76
      %p79 = scmp.ne.s32.totalorder %s64, %s78
      %p80 = scmp.eq.s32.totalorder %s19, 0
      %p81 = por %p79, %p80
      %s83 = sadd.s32 %s82, 1
      %p86 = scmp.eq.s32.totalorder %s13, 1
      %p87 = scmp.ne.s32.totalorder %s82, %s84
      %p88 = scmp.eq.s32.totalorder %s13, 0
      %p89 = por %p87, %p88
      %p90 = scmp.ne.s32.totalorder %s82, %s84
      %p91 = scmp.eq.s32.totalorder %s18, 1
      %p92 = por %p90, %p91
      %p93 = scmp.ne.s32.totalorder %s84, %s85
      %p94 = scmp.eq.s32.totalorder %s18, 0
      %p95 = por %p93, %p94
      %p96 = scmp.ne.s32.totalorder %s84, %s85
      %p97 = scmp.eq.s32.totalorder %s19, 1
      %p98 = por %p96, %p97
      %p100 = scmp.ne.s32.totalorder %s85, %s99
      %p101 = scmp.eq.s32.totalorder %s19, 0
      %p102 = por %p100, %p101
      %s103 = ssub.s32 %s20, %s32
      %s104 = ssub.s32 %s21, %s28
      %s105 = sor.u32 %s103, %s104
      %p106 = scmp.eq.s32.totalorder %s105, 0
      %s108 = sadd.s32 %s107, 1
      %s109 = scalar_select %p106, %s107, %s108
      %p112 = pneg %p106
      %p113 = scmp.eq.s32.totalorder %s13, 1
      %p114 = por %p112, %p113
      %p115 = scmp.ne.s32.totalorder %s107, %s110
      %p116 = scmp.eq.s32.totalorder %s13, 0
      %p117 = por %p115, %p116
      %p118 = scmp.ne.s32.totalorder %s107, %s110
      %p119 = scmp.eq.s32.totalorder %s18, 1
      %p120 = por %p118, %p119
      %p121 = scmp.ne.s32.totalorder %s110, %s111
      %p122 = scmp.eq.s32.totalorder %s18, 0
      %p123 = por %p121, %p122
      %p124 = scmp.ne.s32.totalorder %s110, %s111
      %p125 = scmp.eq.s32.totalorder %s19, 1
      %p126 = por %p124, %p125
      %p128 = scmp.ne.s32.totalorder %s111, %s127
      %p129 = scmp.eq.s32.totalorder %s19, 0
      %p130 = por %p128, %p129
      %p131 = scmp.le.s32.totalorder 1, %s13
      %p132 = scmp.lt.s32.totalorder %s13, 3
      %p133 = pnand %p131, %p132
      %p134 = pneg %p133
      // Predicated region
      $region9: #{tpu_custom_call.1} parent=5 // pred_check
        _
      $region10: #{tpu_custom_call.1} parent=5 // pred_check_branch
        %136 = sbr.rel (%p133) target = $region12
      $region11: #{tpu_custom_call.1} parent=5 // pred_region
        %s137 = ssub.s32 %s13, 1
        // Predicated region
        $region13: #{tpu_custom_call.1} parent=11 // pred_check
          %p138 = pneg %p74
        $region14: #{tpu_custom_call.1} parent=11 // pred_check_branch
          %140 = sbr.rel (%p138) target = $region16
        $region15: #{tpu_custom_call.1} parent=11 // pred_region
          %s142 = ssub.s32 128, 128
          %143 = vsyncadd [#allocation4], %s142
          %s145 = sshll.u32 [#allocation3], 4
          %s146 = int_to_ptr.vmem [resolvable:$true] %s145
          %148 = dma.hbm_to_vmem [thread:$0]  %s1, 128, %s146, [#allocation4]
        $region16: #{tpu_custom_call.1} parent=11 // pred_fallthru
          _
        // Predicated region
        $region17: #{tpu_custom_call.1} parent=11 // pred_check
          %p149 = pneg %p95
        $region18: #{tpu_custom_call.1} parent=11 // pred_check_branch
          %151 = sbr.rel (%p149) target = $region20
        $region19: #{tpu_custom_call.1} parent=11 // pred_region
          _
        $region20: #{tpu_custom_call.1} parent=11 // pred_fallthru
          _
      $region12: #{tpu_custom_call.1} parent=5 // pred_fallthru
        _
      %p152 = scmp.lt.s32.totalorder %s13, 2
      // Predicated region
      $region21: #{tpu_custom_call.1} parent=5 // pred_check
        %p153 = pneg %p152
      $region22: #{tpu_custom_call.1} parent=5 // pred_check_branch
        %155 = sbr.rel (%p153) target = $region24
      $region23: #{tpu_custom_call.1} parent=5 // pred_region
        // Predicated region
        $region25: #{tpu_custom_call.1} parent=23 // pred_check
          %p156 = pneg %p47
        $region26: #{tpu_custom_call.1} parent=23 // pred_check_branch
          %158 = sbr.rel (%p156) target = $region28
        $region27: #{tpu_custom_call.1} parent=23 // pred_region
          %p159 = scmp.lt.s32.totalorder %s20, 1
          %s160 = scalar_select %p159, %s20, 1
          %p161 = scmp.lt.s32.totalorder %s21, 0
          %s162 = scalar_select %p161, %s21, 0
          %s163 = sadd.s32 %s162, %s160
          %s164 = smul.addr %s163, 4
          %s165 = scalar_lea.vmem %s0, %s164
        $region28: #{tpu_custom_call.1} parent=23 // pred_fallthru
          _
      $region24: #{tpu_custom_call.1} parent=5 // pred_fallthru
        _
      %p166 = scmp.le.s32.totalorder 1, %s13
      %p167 = scmp.lt.s32.totalorder %s13, 3
      %p168 = pnand %p166, %p167
      %p169 = pneg %p168
      // Predicated region
      $region29: #{tpu_custom_call.1} parent=5 // pred_check
        _
      $region30: #{tpu_custom_call.1} parent=5 // pred_check_branch
        %171 = sbr.rel (%p168) target = $region32
      $region31: #{tpu_custom_call.1} parent=5 // pred_region
        %s172 = ssub.s32 %s13, 1
        // Predicated region
        $region33: #{tpu_custom_call.1} parent=31 // pred_check
          %p173 = pneg %p74
        $region34: #{tpu_custom_call.1} parent=31 // pred_check_branch
          %175 = sbr.rel (%p173) target = $region36
        $region35: #{tpu_custom_call.1} parent=31 // pred_region
          %176 = dma.done [#allocation4], 128
        $region36: #{tpu_custom_call.1} parent=31 // pred_fallthru
          _
        %p177 = scmp.lt.s32.totalorder %s22, 1
        %s178 = scalar_select %p177, %s22, 1
        %p179 = scmp.lt.s32.totalorder %s23, 0
        %s180 = scalar_select %p179, %s23, 0
        %s181 = sadd.s32 %s180, %s178
        %s182 = smul.addr %s181, 4
        %s183 = scalar_lea.vmem %s0, %s182
        %p184 = pneg %p53
        %p185 = pneg %p50
        %p186 = pneg %p74
        %p187 = pneg %p71
        %p188 = pneg %p95
        %p189 = pneg %p92
        %p190 = pneg %p123
        %p191 = pneg %p120
        %s192 = sand.u32 %s110, 1
        %s193 = scalar_lea.sflag [#allocation5], %s192
        %s194 = sand.u32 %s110, 1
        %s195 = smul.addr %s194, 8
        %s196 = scalar_lea.vmem [#allocation6], %s195
        %p197 = scmp.lt.s32.totalorder %s22, 1
        %s198 = scalar_select %p197, %s22, 1
        %p199 = scmp.lt.s32.totalorder %s23, 0
        %s200 = scalar_select %p199, %s23, 0
        %s201 = sadd.s32 %s200, %s198
        %s202 = smul.addr %s201, 4
        %s203 = scalar_lea.vmem %s0, %s202
        %v205 = vld [vmem:[%s203] sm:$0xf]
        %p206 = scmp.eq.s32.totalorder %s23, 0
        // Predicated region
        $region37: #{tpu_custom_call.1} parent=31 // pred_check
          %p207 = pneg %p206
        $region38: #{tpu_custom_call.1} parent=31 // pred_check_branch
          %209 = sbr.rel (%p207) target = $region40
        $region39: #{tpu_custom_call.1} parent=31 // pred_region
          %vm210 = vcmask 27648
          %211 = vst.msk [vmem:[#allocation2] sm:$0xf] %vm210, 0.0
        $region40: #{tpu_custom_call.1} parent=31 // pred_fallthru
          _
        %v212 = vld [vmem:[#allocation2] sm:$0xf]
        %214 = vrot.lane.b32.xlu0 %v205, 4
        %v215 = vpop.permute.xlu0 %214
        %vm217 = vcmask 31744
        %v218 = vsel %vm217, %v212, %v215
        %v220 = vrot.slane %v218, 4
        %221 = vrot.lane.b32.xlu0 %v220, 126
        %v222 = vpop.permute.xlu0 %221
        %224 = vrot.lane.b32.xlu0 %v218, 124
        %v225 = vpop.permute.xlu0 %224
        %vm227 = vcmask 1043456
        %v228 = vsel %vm227, %v218, %v222
        %v229 = vld [vmem:[#allocation3] sm:$0xff]
        %v230 = vpack.c.bf16 %v229, %v229
        %v231 = vpack.c.bf16 %v225, %v228
        %v232 = vld [vmem:[%s2] sm:$0xff]
        %234 = vset.pattern.permute.xlu0 0
        %235 = vperm.xlu0 %234, %v232
        %v236 = vpop.permute.xlu0 %235
        %vm238 = vcmask 97280
        %v240 = vsel %vm238, %v230, 0
        %vm242 = vcmask 1045504
        %v244 = vsel %vm242, %v231, 0
        %246 = vmatprep.subr.bf16.mxu0 0
        %247 = vmatpush1.bf16.msra.mxu0 %v244
        %248 = vmatprep.subr.bf16.mxu0 0
        %249 = vmatpush1.bf16.msra.mxu0 0
        %250 = vmatprep.subr.bf16.mxu0 0
        %251 = vmatpush1.bf16.msra.mxu0 0
        %252 = vmatprep.subr.bf16.mxu0 0
        %253 = vmatpush1.bf16.msra.mxu0 0
        %254 = vmatprep.subr.bf16.mxu0 0
        %255 = vmatpush1.bf16.msra.mxu0 0
        %256 = vmatprep.subr.bf16.mxu0 0
        %257 = vmatpush1.bf16.msra.mxu0 0
        %258 = vmatprep.subr.bf16.mxu0 0
        %259 = vmatpush1.bf16.msra.mxu0 0
        %260 = vmatprep.subr.bf16.mxu0 0
        %261 = vmatpush1.bf16.msra.mxu0 0
        %262 = vmatprep.subr.bf16.mxu0 0
        %263 = vmatpush1.bf16.msra.mxu0 0
        %264 = vmatprep.subr.bf16.mxu0 0
        %265 = vmatpush1.bf16.msra.mxu0 0
        %266 = vmatprep.subr.bf16.mxu0 0
        %267 = vmatpush1.bf16.msra.mxu0 0
        %268 = vmatprep.subr.bf16.mxu0 0
        %269 = vmatpush1.bf16.msra.mxu0 0
        %270 = vmatprep.subr.bf16.mxu0 0
        %271 = vmatpush1.bf16.msra.mxu0 0
        %272 = vmatprep.subr.bf16.mxu0 0
        %273 = vmatpush1.bf16.msra.mxu0 0
        %274 = vmatprep.subr.bf16.mxu0 0
        %275 = vmatpush1.bf16.msra.mxu0 0
        %276 = vmatprep.subr.bf16.mxu0 0
        %277 = vmatpush1.bf16.msra.mxu0 0
        %278 = vmatprep.mubr.bf16.mxu0 0
        %279 = vmatmul.mubr.bf16.gmra.mrb[0].mxu0 %v240
        %v280 = vpop.f32.mrb[0].mxu0
        %v281 = vadd.f32 %v236, %v280
        %v282 = vpop.f32.mrb[0].mxu0
        %v283 = vpop.f32.mrb[0].mxu0
        %v284 = vpop.f32.mrb[0].mxu0
        %285 = vdwg.mxu0
        %vm286 = vcmask 130048
        %287 = vst.msk [vmem:[%s196] sm:$0xff] %vm286, %v281
        %288 = vrot.lane.b32.xlu0 %v218, 112
        %v289 = vpop.permute.xlu0 %288
        %vm291 = vcmask 27648
        %292 = vst.msk [vmem:[#allocation2] sm:$0xf] %vm291, %v289
        %s293 = sand.u32 %s110, 1
        %s294 = scalar_lea.sflag [#allocation5], %s293
        %s295 = sand.u32 %s110, 1
        %s296 = smul.addr %s295, 8
        %s297 = scalar_lea.vmem [#allocation6], %s296
        // Predicated region
        $region41: #{tpu_custom_call.1} parent=31 // pred_check
          %p298 = pneg %p120
        $region42: #{tpu_custom_call.1} parent=31 // pred_check_branch
          %300 = sbr.rel (%p298) target = $region44
        $region43: #{tpu_custom_call.1} parent=31 // pred_region
          %s302 = ssub.s32 128, 128
          %303 = vsyncadd %s294, %s302
          %s304 = sadd.s32 %s23, %s22
          %s305 = smul.addr %s304, 128
          %s306 = scalar_lea.hbm %s3, %s305
          %s308 = sshll.u32 %s297, 4
          %s309 = int_to_ptr.vmem [resolvable:$true] %s308
          %311 = dma.vmem_to_hbm [thread:$0]  %s309, 128, %s306, %s294
        $region44: #{tpu_custom_call.1} parent=31 // pred_fallthru
          _
      $region32: #{tpu_custom_call.1} parent=5 // pred_fallthru
        _
      %p312 = scmp.le.s32.totalorder 2, %s13
      // Predicated region
      $region45: #{tpu_custom_call.1} parent=5 // pred_check
        %p313 = pneg %p312
      $region46: #{tpu_custom_call.1} parent=5 // pred_check_branch
        %315 = sbr.rel (%p313) target = $region48
      $region47: #{tpu_custom_call.1} parent=5 // pred_region
        %s316 = ssub.s32 %s13, 2
        // Predicated region
        $region49: #{tpu_custom_call.1} parent=47 // pred_check
          %p317 = pneg %p126
        $region50: #{tpu_custom_call.1} parent=47 // pred_check_branch
          %319 = sbr.rel (%p317) target = $region52
        $region51: #{tpu_custom_call.1} parent=47 // pred_region
          %s320 = sand.u32 %s111, 1
          %s321 = scalar_lea.sflag [#allocation5], %s320
          %s322 = sand.u32 %s111, 1
          %s323 = smul.addr %s322, 8
          %s324 = scalar_lea.vmem [#allocation6], %s323
          %325 = dma.done %s321, 128
        $region52: #{tpu_custom_call.1} parent=47 // pred_fallthru
          _
      $region48: #{tpu_custom_call.1} parent=5 // pred_fallthru
        _
    $region6: #{tpu_custom_call.1} parent=1 // loop_footer
      %s17 = sadd.s32 1, %s13
    $region7: #{tpu_custom_call.1} parent=1 // loop_footer_branch
      %12 = sbr.rel target = $region3
    $region8: #{tpu_custom_call.1} parent=1 // loop_exit
      _
    %326 = vsyncpa [#allocation4], 1
    %s327 = scalar_lea.sflag [#allocation4], 1
    %328 = vsyncpa %s327, 1
    %329 = vsyncpa [#allocation5], 1
    %s330 = scalar_lea.sflag [#allocation5], 1
    %331 = vsyncpa %s330, 1

</llo_original>
